<compile_context>
chip_gen: v6e
topology: v6e:2x2x1
jax: 0.10.0
libtpu: 0.0.40
codegen_flags: <defaults>
</compile_context>

<pallas_src>
import functools

import jax
import jax.numpy as jnp
from jax import lax
from jax.experimental import pallas as pl
from jax.experimental.pallas import tpu as pltpu


def _round_up(x, m):
    return ((x + m - 1) // m) * m


def _pow(x, gamma):
    """(x)**gamma with a cheap multiply chain for non-negative integer gamma."""
    g = float(gamma)
    if g == int(g) and int(g) >= 0:
        n = int(g)
        if n == 0:
            return jnp.ones_like(x)
        r = x
        for _ in range(n - 1):
            r = r * x
        return r
    # Non-integer gamma path: valid for alpha >= 0 (then ce >= 0, pt <= 1).
    return jnp.power(jnp.maximum(x, 0.0), g)


def _focal_loss_kernel(n_ref, x_ref, t_ref, a_ref, out_ref, acc_ref,
                       *, gamma, block_cols):
    # n_ref  : SMEM (1,) int32   number of valid samples (scalar prefetch)
    # x_ref  : (C, B)            logits block, classes on sublanes, batch on lanes
    # t_ref  : (1, B) int32      target class per sample
    # a_ref  : (C, 1) f32        per-class weight (ones if alpha=None)
    # out_ref: SMEM (1, 1) f32   mean focal loss
    # acc_ref: VMEM (1, B) f32   per-lane partial sums across grid steps
    j = pl.program_id(0)

    @pl.when(j == 0)
    def _init():
        acc_ref[...] = jnp.zeros_like(acc_ref)

    x = x_ref[...].astype(jnp.float32)            # (C, B) cast in VMEM only
    t = t_ref[...]                                # (1, B) int32
    a = a_ref[...].astype(jnp.float32)            # (C, 1)

    # Numerically stable log-softmax over the class (sublane) axis.
    m = jnp.max(x, axis=0, keepdims=True)                         # (1, B)
    z = x - m
    lse = jnp.log(jnp.sum(jnp.exp(z), axis=0, keepdims=True))     # (1, B)

    # Fused one-hot gather of target logit AND class weight (single reduce):
    #   ce = alpha[t] * (lse - z[t]) = sum_c onehot_c * alpha_c * (lse - z_c)
    cls = lax.broadcasted_iota(jnp.int32, x.shape, 0)             # (C, B)
    onehot = (cls == t).astype(jnp.float32)                       # (C, B)
    ce = jnp.sum(onehot * (a * (lse - z)), axis=0, keepdims=True)  # (1, B)

    pt = jnp.exp(-ce)
    focal = _pow(1.0 - pt, gamma) * ce                            # (1, B)

    # Mask padded tail samples of the (possibly partial) last block.  This also
    # guards against garbage (NaN/Inf) in the out-of-bounds region of the tile.
    n_valid = n_ref[0]
    col = lax.broadcasted_iota(jnp.int32, focal.shape, 1) + j * block_cols
    focal = jnp.where(col < n_valid, focal, 0.0)

    # Plain VPU add per step; no cross-lane reduce, no SMEM read-modify-write.
    acc_ref[...] += focal

    @pl.when(j == pl.num_programs(0) - 1)
    def _finalize():
        out_ref[0, 0] = jnp.sum(acc_ref[...]) / n_valid.astype(jnp.float32)


def focal_loss_forward_cn(logits_cn, targets, alpha=None, gamma=2, block=8192):
    """FocalLoss forward on class-major logits.

    logits_cn: [C, N] logits (any float dtype), targets: [N] int class ids.
    This is the zero-extra-HBM-traffic entry point: producers that can emit
    their classifier output transposed should call this directly.
    """
    C, N = logits_cn.shape
    if alpha is None:
        alpha = jnp.ones((C,), jnp.float32)

    # Large lane-dense batch tiles (multiple of 128), clamped to the batch.
    block = int(block)
    block = max(128, min(_round_up(block, 128), _round_up(N, 128)))
    n_blocks = pl.cdiv(N, block)

    t2 = targets.astype(jnp.int32).reshape(1, N)            # tiny
    a2 = jnp.asarray(alpha, jnp.float32).reshape(C, 1)      # tiny
    n_arr = jnp.array([N], jnp.int32)                       # scalar prefetch

    kernel = functools.partial(_focal_loss_kernel, gamma=gamma, block_cols=block)

    out = pl.pallas_call(
        kernel,
        out_shape=jax.ShapeDtypeStruct((1, 1), jnp.float32),
        grid_spec=pltpu.PrefetchScalarGridSpec(
            num_scalar_prefetch=1,
            grid=(n_blocks,),
            in_specs=[
                pl.BlockSpec((C, block), lambda j, n: (0, j)),
                pl.BlockSpec((1, block), lambda j, n: (0, j)),
                pl.BlockSpec((C, 1), lambda j, n: (0, 0)),
            ],
            out_specs=pl.BlockSpec(memory_space=pltpu.MemorySpace.SMEM),
            scratch_shapes=[pltpu.VMEM((1, block), jnp.float32)],
        ),
        compiler_params=pltpu.CompilerParams(
            dimension_semantics=("arbitrary",)),   # grid axis is a reduction
    )(n_arr, logits_cn, t2, a2)

    return out[0, 0]


def focal_loss_forward(inputs, targets, alpha=None, gamma=2, block=8192):
    """FocalLoss forward matching the nn.Module interface.

    inputs: [N, C] logits, targets: [N] int class ids.
    Single XLA transpose (in the input dtype, no pad, no upcast) feeds the
    class-major kernel; use focal_loss_forward_cn to skip it entirely.
    """
    x_cn = jnp.transpose(inputs, (1, 0))
    return focal_loss_forward_cn(x_cn, targets, alpha=alpha, gamma=gamma,
                                 block=block)


def reference_forward(inputs, targets, alpha=None, gamma=2):
    """Pure-JAX reference matching torch's FocalLoss.forward."""
    logp = jax.nn.log_softmax(inputs.astype(jnp.float32), axis=-1)
    ce = -jnp.take_along_axis(logp, targets[:, None].astype(jnp.int32),
                              axis=-1)[:, 0]
    if alpha is not None:
        ce = ce * alpha[targets]
    pt = jnp.exp(-ce)
    return jnp.mean((1.0 - pt) ** gamma * ce)


if __name__ == "__main__":
    key = jax.random.PRNGKey(0)
    kx, kt, ka = jax.random.split(key, 3)

    N, C = 200, 8
    logits = 2.0 * jax.random.normal(kx, (N, C), jnp.float32)
    targets = jax.random.randint(kt, (N,), 0, C, jnp.int32)
    alpha = jax.random.uniform(ka, (C,), jnp.float32, minval=0.5, maxval=1.5)

    # Default module config: alpha=None, gamma=2 (single grid step).
    loss = jax.block_until_ready(focal_loss_forward(logits, targets))
    ref = reference_forward(logits, targets)
    assert jnp.allclose(loss, ref, atol=1e-5, rtol=1e-5), (float(loss), float(ref))

    # Per-class weights, gamma=3, small block -> 2 grid steps + masked tail.
    loss_w = jax.block_until_ready(
        focal_loss_forward(logits, targets, alpha=alpha, gamma=3, block=128))
    ref_w = reference_forward(logits, targets, alpha=alpha, gamma=3)
    assert jnp.allclose(loss_w, ref_w, atol=1e-5, rtol=1e-5), (
        float(loss_w), float(ref_w))

    # Producer-transposed fast path (no wrapper-side HBM pass at all).
    loss_t = jax.block_until_ready(
        focal_loss_forward_cn(jnp.transpose(logits, (1, 0)), targets,
                              alpha=alpha, gamma=3))
    assert jnp.allclose(loss_t, ref_w, atol=1e-5, rtol=1e-5), (
        float(loss_t), float(ref_w))

    print("KERNEL_OK")
</pallas_src>

<mosaic_0001>
module attributes {stable_mosaic.version = 11 : i64} {
  func.func @_focal_loss_kernel(%arg0: i32, %arg1: memref<1xi32, #tpu.memory_space<smem>>, %arg2: memref<8x256xf32, #tpu.memory_space<vmem>>, %arg3: memref<1x256xi32, #tpu.memory_space<vmem>>, %arg4: memref<8x1xf32, #tpu.memory_space<vmem>>, %arg5: memref<1x1xf32, #tpu.memory_space<smem>>, %arg6: memref<1x256xf32, #tpu.memory_space<vmem>>) attributes {dimension_semantics = [#tpu.dimension_semantics<arbitrary>], iteration_bounds = array<i64: 1>, scalar_prefetch = 1 : i64, scratch_operands = 1 : i64, tpu.core_type = #tpu.core_type<tc>, window_params = [{transform_indices = @transform_0, window_bounds = array<i64: 8, 256>}, {transform_indices = @transform_1, window_bounds = array<i64: 1, 256>}, {pipeline_mode = #tpu.pipeline_mode<synchronous>, transform_indices = @transform_2, window_bounds = array<i64: 8, 1>}, {transform_indices = @transform_3, window_bounds = array<i64: 1, 1>}]} {
    %c0_i32 = arith.constant 0 : i32
    %0 = arith.cmpi eq, %arg0, %c0_i32 : i32
    %1 = arith.extui %0 : i1 to i32
    %c0_i32_0 = arith.constant 0 : i32
    %2 = arith.cmpi ne, %1, %c0_i32_0 : i32
    scf.if %2 {
      %cst_18 = arith.constant 0.000000e+00 : f32
      %48 = vector.broadcast %cst_18 : f32 to vector<1x256xf32>
      %c0_19 = arith.constant 0 : index
      %c0_20 = arith.constant 0 : index
      %49 = vector.load %arg6[%c0_19, %c0_20] : memref<1x256xf32, #tpu.memory_space<vmem>>, vector<1x256xf32>
      tpu.vector_store %arg6[%c0_19, %c0_20], %48 {strides = array<i32>} : memref<1x256xf32, #tpu.memory_space<vmem>>, vector<1x256xf32>,
    } else {
    }
    %c0 = arith.constant 0 : index
    %c0_1 = arith.constant 0 : index
    %3 = vector.load %arg2[%c0, %c0_1] : memref<8x256xf32, #tpu.memory_space<vmem>>, vector<8x256xf32>
    %c0_2 = arith.constant 0 : index
    %c0_3 = arith.constant 0 : index
    %4 = vector.load %arg3[%c0_2, %c0_3] : memref<1x256xi32, #tpu.memory_space<vmem>>, vector<1x256xi32>
    %c0_4 = arith.constant 0 : index
    %c0_5 = arith.constant 0 : index
    %5 = vector.load %arg4[%c0_4, %c0_5] : memref<8x1xf32, #tpu.memory_space<vmem>>, vector<8x1xf32>
    %cst = arith.constant dense<0xFF800000> : vector<256xf32>
    %6 = vector.multi_reduction <maximumf>, %3, %cst [0] : vector<8x256xf32> to vector<256xf32>
    %7 = vector.shape_cast %6 : vector<256xf32> to vector<1x256xf32>
    %8 = vector.broadcast %7 : vector<1x256xf32> to vector<8x256xf32>
    %9 = arith.subf %3, %8 : vector<8x256xf32>
    %10 = math.exp %9 : vector<8x256xf32>
    %cst_6 = arith.constant dense<0.000000e+00> : vector<256xf32>
    %11 = vector.multi_reduction <add>, %10, %cst_6 [0] : vector<8x256xf32> to vector<256xf32>
    %12 = vector.shape_cast %11 : vector<256xf32> to vector<1x256xf32>
    %13 = math.log %12 : vector<1x256xf32>
    %14 = tpu.iota {dimensions = array<i32: 0>} : vector<8x256xi32>
    %15 = vector.broadcast %4 : vector<1x256xi32> to vector<8x256xi32>
    %16 = arith.cmpi eq, %14, %15 : vector<8x256xi32>
    %17 = arith.extui %16 : vector<8x256xi1> to vector<8x256xi32>
    %18 = arith.sitofp %17 : vector<8x256xi32> to vector<8x256xf32>
    %19 = vector.broadcast %13 : vector<1x256xf32> to vector<8x256xf32>
    %20 = arith.subf %19, %9 : vector<8x256xf32>
    %21 = vector.broadcast %5 : vector<8x1xf32> to vector<8x256xf32>
    %22 = arith.mulf %21, %20 : vector<8x256xf32>
    %23 = arith.mulf %18, %22 : vector<8x256xf32>
    %cst_7 = arith.constant dense<0.000000e+00> : vector<256xf32>
    %24 = vector.multi_reduction <add>, %23, %cst_7 [0] : vector<8x256xf32> to vector<256xf32>
    %25 = vector.shape_cast %24 : vector<256xf32> to vector<1x256xf32>
    %cst_8 = arith.constant 0.000000e+00 : f32
    %26 = vector.broadcast %cst_8 : f32 to vector<1x256xf32>
    %27 = arith.subf %26, %25 : vector<1x256xf32>
    %28 = math.exp %27 : vector<1x256xf32>
    %cst_9 = arith.constant 1.000000e+00 : f32
    %29 = vector.broadcast %cst_9 : f32 to vector<1x256xf32>
    %30 = arith.subf %29, %28 : vector<1x256xf32>
    %31 = arith.mulf %30, %30 : vector<1x256xf32>
    %32 = arith.mulf %31, %25 : vector<1x256xf32>
    %c0_10 = arith.constant 0 : index
    %33 = memref.load %arg1[%c0_10] : memref<1xi32, #tpu.memory_space<smem>>
    %34 = tpu.iota {dimensions = array<i32: 1>} : vector<1x256xi32>
    %c256_i32 = arith.constant 256 : i32
    %35 = arith.muli %arg0, %c256_i32 : i32
    %36 = vector.broadcast %35 : i32 to vector<1x256xi32>
    %37 = arith.addi %34, %36 : vector<1x256xi32>
    %38 = vector.broadcast %33 : i32 to vector<1x256xi32>
    %39 = arith.cmpi slt, %37, %38 : vector<1x256xi32>
    %cst_11 = arith.constant 0.000000e+00 : f32
    %40 = vector.broadcast %cst_11 : f32 to vector<1x256xf32>
    %41 = arith.select %39, %32, %40 : vector<1x256xi1>, vector<1x256xf32>
    %c0_12 = arith.constant 0 : index
    %c0_13 = arith.constant 0 : index
    %42 = vector.load %arg6[%c0_12, %c0_13] : memref<1x256xf32, #tpu.memory_space<vmem>>, vector<1x256xf32>
    %43 = arith.addf %42, %41 : vector<1x256xf32>
    %c0_14 = arith.constant 0 : index
    %c0_15 = arith.constant 0 : index
    %44 = vector.load %arg6[%c0_14, %c0_15] : memref<1x256xf32, #tpu.memory_space<vmem>>, vector<1x256xf32>
    tpu.vector_store %arg6[%c0_14, %c0_15], %43 {strides = array<i32>} : memref<1x256xf32, #tpu.memory_space<vmem>>, vector<1x256xf32>,
    %c0_i32_16 = arith.constant 0 : i32
    %45 = arith.cmpi eq, %arg0, %c0_i32_16 : i32
    %46 = arith.extui %45 : i1 to i32
    %c0_i32_17 = arith.constant 0 : i32
    %47 = arith.cmpi ne, %46, %c0_i32_17 : i32
    scf.if %47 {
      %c0_18 = arith.constant 0 : index
      %c0_19 = arith.constant 0 : index
      %48 = vector.load %arg6[%c0_18, %c0_19] : memref<1x256xf32, #tpu.memory_space<vmem>>, vector<1x256xf32>
      %49 = vector.shape_cast %48 : vector<1x256xf32> to vector<1x1x256xf32>
      %cst_20 = arith.constant dense<0.000000e+00> : vector<1xf32>
      %50 = vector.multi_reduction <add>, %49, %cst_20 [1, 2] : vector<1x1x256xf32> to vector<1xf32>
      %51 = vector.shape_cast %50 : vector<1xf32> to vector<1x1x1xf32>
      %52 = vector.extract %51[0, 0, 0] : f32 from vector<1x1x1xf32>
      %53 = arith.sitofp %33 : i32 to f32
      %54 = arith.divf %52, %53 : f32
      %c0_21 = arith.constant 0 : index
      %c0_22 = arith.constant 0 : index
      %55 = memref.load %arg5[%c0_21, %c0_22] : memref<1x1xf32, #tpu.memory_space<smem>>
      memref.store %54, %arg5[%c0_21, %c0_22] : memref<1x1xf32, #tpu.memory_space<smem>>
    } else {
    }
    return
  }
  func.func @transform_0(%arg0: i32, %arg1: memref<1xi32, #tpu.memory_space<smem>>) -> (i32, i32) {
    %c0_i32 = arith.constant 0 : i32
    %c0_i32_0 = arith.constant 0 : i32
    return %c0_i32, %arg0 : i32, i32
  }
  func.func @transform_1(%arg0: i32, %arg1: memref<1xi32, #tpu.memory_space<smem>>) -> (i32, i32) {
    %c0_i32 = arith.constant 0 : i32
    %c0_i32_0 = arith.constant 0 : i32
    return %c0_i32, %arg0 : i32, i32
  }
  func.func @transform_2(%arg0: i32, %arg1: memref<1xi32, #tpu.memory_space<smem>>) -> (i32, i32) {
    %c0_i32 = arith.constant 0 : i32
    %c0_i32_0 = arith.constant 0 : i32
    %c0_i32_1 = arith.constant 0 : i32
    return %c0_i32, %c0_i32_0 : i32, i32
  }
  func.func @transform_3(%arg0: i32, %arg1: memref<1xi32, #tpu.memory_space<smem>>) -> (i32, i32) {
    %c0_i32 = arith.constant 0 : i32
    %c0_i32_0 = arith.constant 0 : i32
    %c0_i32_1 = arith.constant 0 : i32
    return %c0_i32, %c0_i32_0 : i32, i32
  }
}

</mosaic_0001>

<llo_original>
// kernel: tpu_custom_call.1
$region0: #{tpu_custom_call.1}
  #allocation0 [shape = 'u32[]', space=smem, size = 0x4, offset = 0x4, fixed_abs, tag = 'smem constant byte address 0x4 - core index']
  #allocation1 [shape = 'u32[144,128]{1,0:T(1,128)}', space=vmem, size = 0x12000, scoped, tag = 'internal scratch']
  #allocation2 [shape = 'f32[1,256]{1,0:T(1,128)}', space=vmem, size = 0x400, scoped, tag = 'scratch operand']
  #allocation3 [shape = 's32[1]{0}', space=sflag, size = 0x4, scoped, tag = 'scoped memory for tpu_custom_call.1']
  #allocation4 [shape = 's32[1]{0:T(128)S(6)}', space=smem, size = 0x200, scoped, tag = 'prefetched SMEM operand 0']
  %s0 = inlined_call_operand.<no memory space> [shape: s32[1], index: 0, kind: input, shape index: {}]
  %s1 = inlined_call_operand.hbm [shape: f32[8,200], index: 1, kind: input, shape index: {}]
  %s2 = inlined_call_operand.vmem [shape: s32[1,200], index: 2, kind: input, shape index: {}]
  %s3 = inlined_call_operand.vmem [shape: f32[8,1], index: 3, kind: input, shape index: {}]
  %s4 = inlined_call_operand.hbm [shape: f32[1,1], index: 4, kind: output, shape index: {}]
  %s5 = sld [smem:[#allocation0]]
  $region34: #{tpu_custom_call.1} parent=0
    _
  %s7 = ssub.s32 1, %s5
  %s8 = scalar_select 0, %s7, %s5
  %9 = sst [smem:[#allocation4]] %s0
  $region1: #{tpu_custom_call.1} parent=0
    #allocation5 [shape = 'u8[8192]{0}', space=vmem, size = 0x2000, scoped, tag = 'input window, operand 1, single buffered']
    #allocation6 [shape = 's32[1]{0}', space=sflag, size = 0x4, scoped, tag = 'scoped memory for tpu_custom_call.1']
    #allocation7 [shape = 's32[1]{0}', space=sflag, size = 0x4, scoped, tag = 'scoped memory for tpu_custom_call.1']
    #allocation8 [shape = 'u8[512]{0}', space=smem, size = 0x200, scoped, tag = 'output window, operand 0, single buffered']
    %10 = vsyncpa [#allocation6], 0
    %11 = vsyncpa [#allocation7], 0
    // Predicated region
    $region2: #{tpu_custom_call.1} parent=1 // pred_check
      _
    $region3: #{tpu_custom_call.1} parent=1 // pred_check_branch
      %13 = sbr.rel (0) target = $region5
    $region4: #{tpu_custom_call.1} parent=1 // pred_region
      %s15 = ssub.s32 256, 256
      %16 = vsyncadd [#allocation6], %s15
      %s18 = sshll.u32 [#allocation5], 4
      %s19 = int_to_ptr.vmem [resolvable:$true] %s18
      %21 = dma.hbm_to_vmem [thread:$0]  %s1, 256, %s19, [#allocation6]
    $region5: #{tpu_custom_call.1} parent=1 // pred_fallthru
      _
    // Predicated region
    $region6: #{tpu_custom_call.1} parent=1 // pred_check
      _
    $region7: #{tpu_custom_call.1} parent=1 // pred_check_branch
      %23 = sbr.rel (0) target = $region9
    $region8: #{tpu_custom_call.1} parent=1 // pred_region
      _
    $region9: #{tpu_custom_call.1} parent=1 // pred_fallthru
      _
    // Predicated region
    $region10: #{tpu_custom_call.1} parent=1 // pred_check
      _
    $region11: #{tpu_custom_call.1} parent=1 // pred_check_branch
      %25 = sbr.rel (0) target = $region13
    $region12: #{tpu_custom_call.1} parent=1 // pred_region
      _
    $region13: #{tpu_custom_call.1} parent=1 // pred_fallthru
      _
    // Predicated region
    $region14: #{tpu_custom_call.1} parent=1 // pred_check
      _
    $region15: #{tpu_custom_call.1} parent=1 // pred_check_branch
      %27 = sbr.rel (0) target = $region17
    $region16: #{tpu_custom_call.1} parent=1 // pred_region
      %28 = dma.done [#allocation6], 256
    $region17: #{tpu_custom_call.1} parent=1 // pred_fallthru
      _
    %p29 = scmp.eq.s32.totalorder 0, 0
    // Predicated region
    $region18: #{tpu_custom_call.1} parent=1 // pred_check
      %p30 = pneg %p29
    $region19: #{tpu_custom_call.1} parent=1 // pred_check_branch
      %32 = sbr.rel (%p30) target = $region21
    $region20: #{tpu_custom_call.1} parent=1 // pred_region
      %v33 = vlaneseq
      %vm34 = vcmp.ge.s32.totalorder %v33, 0
      %vm35 = vcmp.lt.s32.totalorder %v33, 256
      %vm36 = vmand %vm34, %vm35
      %37 = vst.msk [vmem:[#allocation2] sm:$0x3] %vm36, 0.0
    $region21: #{tpu_custom_call.1} parent=1 // pred_fallthru
      _
    %v38 = vld [vmem:[#allocation5] sm:$0xff]
    %v39 = vld [vmem:[#allocation5 + $0x8] sm:$0xff]
    %v40 = vld [vmem:[%s2] sm:$0x3]
    %v41 = vld [vmem:[%s3] sm:$0xff]
    %v42 = vrot.slane %v38, 4
    %v43 = vmax.f32 %v38, %v42
    %v44 = vrot.slane %v43, 2
    %v45 = vmax.f32 %v43, %v44
    %v46 = vrot.slane %v45, 1
    %v47 = vmax.f32 %v45, %v46
    %v48 = vrot.slane %v39, 4
    %v49 = vmax.f32 %v39, %v48
    %v50 = vrot.slane %v49, 2
    %v51 = vmax.f32 %v49, %v50
    %v52 = vrot.slane %v51, 1
    %v53 = vmax.f32 %v51, %v52
    %v54 = vsub.f32 %v38, %v47
    %v55 = vsub.f32 %v39, %v53
    %v56 = vmul.f32 %v54, 1.442695
    %v57 = vpow.pop %v56
    %v58 = vmul.f32 %v55, 1.442695
    %v59 = vpow.pop %v58
    %v60 = vrot.slane %v57, 4
    %v61 = vadd.f32 %v57, %v60
    %v62 = vrot.slane %v61, 2
    %v63 = vadd.f32 %v61, %v62
    %v64 = vrot.slane %v63, 1
    %v65 = vadd.f32 %v63, %v64
    %v66 = vrot.slane %v59, 4
    %v67 = vadd.f32 %v59, %v66
    %v68 = vrot.slane %v67, 2
    %v69 = vadd.f32 %v67, %v68
    %v70 = vrot.slane %v69, 1
    %v71 = vadd.f32 %v69, %v70
    %v72 = vlog2.pop %v65
    %v73 = vmul.f32 %v72, 0.6931472
    %v74 = vlog2.pop %v71
    %v75 = vmul.f32 %v74, 0.6931472
    %v76 = vlaneseq
    %v77 = vshrl.u32 %v76, 7
    %v78 = vlaneseq
    %v79 = vshrl.u32 %v78, 7
    %v80 = vsub.s32 0, %v79
    %v81 = vrot.slane %v40, %v80
    %v82 = vlaneseq
    %v83 = vshrl.u32 %v82, 7
    %v84 = vsub.s32 1, %v83
    %v85 = vrot.slane %v40, %v84
    %vm86 = vcmp.eq.s32.totalorder %v77, %v81
    %vm87 = vcmp.eq.s32.totalorder %v77, %v85
    %v88 = vsel %vm86, 1, 0
    %v89 = vsel %vm87, 1, 0
    %v90 = vcvt.s32.f32 %v88
    %v91 = vcvt.s32.f32 %v89
    %v92 = vsub.f32 %v73, %v54
    %v93 = vsub.f32 %v75, %v55
    %95 = vset.pattern.permute.xlu0 0
    %96 = vperm.xlu0 %95, %v41
    %v97 = vpop.permute.xlu0 %96
    %v99 = vmul.f32 %v97, %v92
    %v100 = vmul.f32 %v97, %v93
    %v101 = vmul.f32 %v90, %v99
    %v102 = vmul.f32 %v91, %v100
    %v103 = vrot.slane %v101, 4
    %v104 = vadd.f32 %v101, %v103
    %v105 = vrot.slane %v104, 2
    %v106 = vadd.f32 %v104, %v105
    %v107 = vrot.slane %v106, 1
    %v108 = vadd.f32 %v106, %v107
    %v109 = vrot.slane %v102, 4
    %v110 = vadd.f32 %v102, %v109
    %v111 = vrot.slane %v110, 2
    %v112 = vadd.f32 %v110, %v111
    %v113 = vrot.slane %v112, 1
    %v114 = vadd.f32 %v112, %v113
    %v115 = vsub.f32 0.0, %v108
    %v116 = vsub.f32 0.0, %v114
    %v117 = vmul.f32 %v115, 1.442695
    %v118 = vpow.pop %v117
    %v119 = vmul.f32 %v116, 1.442695
    %v120 = vpow.pop %v119
    %v121 = vsub.f32 1.0, %v118
    %v122 = vsub.f32 1.0, %v120
    %v123 = vmul.f32 %v121, %v121
    %v124 = vmul.f32 %v122, %v122
    %v125 = vmul.f32 %v123, %v108
    %v126 = vmul.f32 %v124, %v114
    %s127 = sld [smem:[#allocation4]]
    %v128 = vlaneseq
    %v129 = vand.u32 %v128, 127
    %v130 = vadd.s32 %v129, 128
    %s131 = smul.u32 0, 256
    %v132 = vstv %s131
    %v133 = vadd.s32 %v129, %v132
    %v134 = vadd.s32 %v130, %v132
    %v135 = vstv %s127
    %vm136 = vcmp.lt.s32.totalorder %v133, %v135
    %vm137 = vcmp.lt.s32.totalorder %v134, %v135
    %v138 = vsel %vm136, %v125, 0.0
    %v139 = vsel %vm137, %v126, 0.0
    %v140 = vld [vmem:[#allocation2] sm:$0x3]
    %v143 = vcombine.low %v138, %v139
    %v145 = vunpack.c.l.s4 1966171168
    %v146 = vunpack.c.0.s8 %v145
    %v147 = vlaneseq
    %v148 = vshrl.u32 %v147, 7
    %v149 = vsub.s32 %v146, %v148
    %v150 = vrot.slane %v143, %v149
    %v152 = vunpack.c.l.s4 1966171168
    %v153 = vunpack.c.0.s8 %v152
    %v154 = vlaneseq
    %v155 = vshrl.u32 %v154, 7
    %v156 = vsub.s32 %v153, %v155
    %v157 = vrot.slane %v150, %v156
    %v159 = vadd.f32 %v140, %v157
    %v160 = vlaneseq
    %vm161 = vcmp.ge.s32.totalorder %v160, 0
    %vm162 = vcmp.lt.s32.totalorder %v160, 256
    %vm163 = vmand %vm161, %vm162
    %164 = vst.msk [vmem:[#allocation2] sm:$0x3] %vm163, %v159
    // Predicated region
    $region22: #{tpu_custom_call.1} parent=1 // pred_check
      %p165 = pneg %p29
    $region23: #{tpu_custom_call.1} parent=1 // pred_check_branch
      %167 = sbr.rel (%p165) target = $region25
    $region24: #{tpu_custom_call.1} parent=1 // pred_region
      %v168 = vld [vmem:[#allocation2] sm:$0x3]
      %v170 = vlaneseq
      %v171 = vshrl.u32 %v170, 7
      %v172 = vsub.s32 0, %v171
      %v173 = vrot.slane %v168, %v172
      %v174 = vlaneseq
      %v175 = vshrl.u32 %v174, 7
      %v176 = vsub.s32 1, %v175
      %v177 = vrot.slane %v168, %v176
      %vm180 = vcmask 1040384
      %v181 = vsel %vm180, %v173, 0.0
      %v182 = vsel %vm180, %v177, 0.0
      %v183 = vadd.f32 %v181, %v182
      %184 = vadd.xlane.f32.xlu0 %v183
      %v185 = vpop.xlane.xlu0 %184
      %v186 = vrot.slane %v185, 4
      %v187 = vadd.f32 %v185, %v186
      %v188 = vrot.slane %v187, 2
      %v189 = vadd.f32 %v187, %v188
      %v190 = vrot.slane %v189, 1
      %v191 = vadd.f32 %v189, %v190
      %s192 = vtos %v191
      %s193 = scvt.s32.f32 %s127
      %v194 = vstv %s193
      %v195 = vrcp.pop %v194
      %s196 = vtos %v195
      %s197 = smul.f32 %s192, %s196
      %s198 = scalar_lea.smem [#allocation8], 0
      %199 = sst [smem:[%s198]] %s197
    $region25: #{tpu_custom_call.1} parent=1 // pred_fallthru
      _
    // Predicated region
    $region26: #{tpu_custom_call.1} parent=1 // pred_check
      _
    $region27: #{tpu_custom_call.1} parent=1 // pred_check_branch
      %201 = sbr.rel (0) target = $region29
    $region28: #{tpu_custom_call.1} parent=1 // pred_region
      %s203 = ssub.s32 16, 16
      %204 = vsyncadd [#allocation7], %s203
      %207 = dma.smem_to_hbm [#allocation8], 16, %s4, [#allocation7]
    $region29: #{tpu_custom_call.1} parent=1 // pred_fallthru
      _
    // Predicated region
    $region30: #{tpu_custom_call.1} parent=1 // pred_check
      _
    $region31: #{tpu_custom_call.1} parent=1 // pred_check_branch
      %209 = sbr.rel (0) target = $region33
    $region32: #{tpu_custom_call.1} parent=1 // pred_region
      %210 = dma.done [#allocation7], 16
    $region33: #{tpu_custom_call.1} parent=1 // pred_fallthru
      _
    %211 = sfence
    %212 = vsyncpa [#allocation6], 1
    %213 = vsyncpa [#allocation7], 1

</llo_original>
